<compile_context>
chip_gen: v5e
topology: v5e:2x2
jax: 0.10.0
libtpu: 0.0.40
codegen_flags: <defaults>
</compile_context>

<pallas_src>
import functools

import jax
import jax.numpy as jnp
from jax import lax
from jax.experimental import pallas as pl
from jax.experimental.pallas import tpu as pltpu

SITE_SIZE = 24
NUM_FEATS = 20
EMB_DIM = 64
FB_OUT = NUM_FEATS * EMB_DIM          # 1280
CONCAT = EMB_DIM + FB_OUT             # 1344
H1, H2, H3 = 256, 128, 16
H3PAD = 128                           # linear3 output padded to full lanes
HEAD_PAD = 128                        # fused xy/floor head padded to full lanes
BN_EPS = 1e-5
MAX_TB = 1024                         # batch tile (rows) — safe for v7x 64 MiB VMEM


def _round_up(n, m):
    return ((n + m - 1) // m) * m


def _mlp_kernel(site_id_ref, feats_ref,
                w_site_ref, w_feat_ref, b1_ref,
                w2_ref, b2_ref, w3_ref, b3_ref,
                w_head_ref, b_head_ref,
                out_ref):
    f32 = jnp.float32
    bf16 = jnp.bfloat16
    tb = out_ref.shape[0]

    # In-kernel embedding "gather": one-hot(site_id) @ folded_table.
    ids = site_id_ref[...]                                           # (TB, 1) int32
    site_iota = lax.broadcasted_iota(jnp.int32, (tb, SITE_SIZE), 1)  # (TB, 24)
    onehot = (site_iota == ids).astype(bf16)                         # (TB, 24)

    feats = feats_ref[...].astype(bf16)                              # (TB, 20)

    # linear1 (bn1/fixed_bssid chain pre-folded into w_site/w_feat/b1) + ReLU
    pre1 = (jnp.dot(onehot, w_site_ref[...], preferred_element_type=f32)
            + jnp.dot(feats, w_feat_ref[...], preferred_element_type=f32)
            + b1_ref[...])
    x1 = jnp.maximum(pre1, 0.0).astype(bf16)                         # (TB, 256)

    # bn2-folded linear2 + ReLU
    x2 = jnp.maximum(
        jnp.dot(x1, w2_ref[...], preferred_element_type=f32) + b2_ref[...],
        0.0).astype(bf16)                                            # (TB, 128)

    # bn3-folded linear3 (zero-padded to 128 lanes) + ReLU
    x3 = jnp.maximum(
        jnp.dot(x2, w3_ref[...], preferred_element_type=f32) + b3_ref[...],
        0.0).astype(bf16)                                            # (TB, 128)

    # bn4-folded fused heads: cols [0:2]=xy (linear), col 2=floor (ReLU), rest 0.
    raw = jnp.dot(x3, w_head_ref[...], preferred_element_type=f32) + b_head_ref[...]
    col = lax.broadcasted_iota(jnp.int32, raw.shape, 1)
    out_ref[...] = jnp.where(col >= 2, jnp.maximum(raw, 0.0), raw)


def init_params(key):
    """Raw PyTorch-layout parameters (same structure as the reference module)."""
    ks = jax.random.split(key, 12)

    def lin(k, fan_in, fan_out):
        bound = 1.0 / jnp.sqrt(float(fan_in))
        kw, kb = jax.random.split(k)
        w = jax.random.uniform(kw, (fan_in, fan_out), jnp.float32, -bound, bound)
        b = jax.random.uniform(kb, (1, fan_out), jnp.float32, -bound, bound)
        return w, b

    def bn(k, c):
        kg, kb, km, kv = jax.random.split(k, 4)
        gamma = 1.0 + 0.1 * jax.random.normal(kg, (c,), jnp.float32)
        beta = 0.1 * jax.random.normal(kb, (c,), jnp.float32)
        mean = 0.1 * jax.random.normal(km, (c,), jnp.float32)
        var = jnp.abs(jax.random.normal(kv, (c,), jnp.float32)) + 0.5
        scale = gamma / jnp.sqrt(var + BN_EPS)
        shift = beta - mean * scale
        return scale[None, :], shift[None, :]

    p = {}
    p['emb'] = jax.random.normal(ks[0], (SITE_SIZE, EMB_DIM), jnp.float32)
    p['fb_bn'] = bn(ks[1], NUM_FEATS)
    p['wfb'], p['bfb'] = lin(ks[2], NUM_FEATS, FB_OUT)
    p['bn1'] = bn(ks[3], CONCAT)
    p['w1'], p['b1'] = lin(ks[4], CONCAT, H1)
    p['bn2'] = bn(ks[5], H1)
    p['w2'], p['b2'] = lin(ks[6], H1, H2)
    p['bn3'] = bn(ks[7], H2)
    p['w3'], p['b3'] = lin(ks[8], H2, H3)
    p['bn4'] = bn(ks[9], H3)
    p['wxy'], p['bxy'] = lin(ks[10], H3, 2)
    p['wfl'], p['bfl'] = lin(ks[11], H3, 1)
    return p


def fold_params(p):
    """Fold BN affines / the fixed_bssid linear chain into adjacent Linear weights.

    Exact algebra in f32 (eval semantics); weights are then cast to bf16 for the
    MXU, biases kept in f32.
    """
    f32 = jnp.float32

    # nn.Embedding(site_size, 64, max_norm=True): renorm rows to L2 norm <= 1.
    # (PyTorch renorms only accessed rows in-place; renorming the whole table
    #  gives identical gathered values in inference.)
    emb = p['emb']
    norms = jnp.sqrt(jnp.sum(emb * emb, axis=1, keepdims=True))
    emb_rn = emb * jnp.minimum(1.0, 1.0 / jnp.maximum(norms, 1e-7))

    bn1s, bn1b = p['bn1']                                   # (1, 1344)
    bn1s_site, bn1s_fb = bn1s[:, :EMB_DIM], bn1s[:, EMB_DIM:]
    bn1b_site, bn1b_fb = bn1b[:, :EMB_DIM], bn1b[:, EMB_DIM:]
    w1a, w1b = p['w1'][:EMB_DIM], p['w1'][EMB_DIM:]         # (64,256), (1280,256)

    fb_s, fb_b = p['fb_bn']                                 # (1, 20)
    wfb, bfb = p['wfb'], p['bfb']                           # (20,1280), (1,1280)

    # fixed_bssid branch: feats -> BN(20) -> Linear(20,1280) -> bn1_fb -> w1b
    wfb1 = wfb * bn1s_fb                                    # (20, 1280)
    w_feat = (fb_s.T * wfb1) @ w1b                          # (20, 256)
    b_fb = (fb_b @ wfb1 + bfb * bn1s_fb + bn1b_fb) @ w1b    # (1, 256)

    # site branch: onehot -> emb_rn -> bn1_site -> w1a
    w_site = emb_rn @ (bn1s_site.T * w1a)                   # (24, 256)
    b_site = bn1b_site @ w1a                                # (1, 256)

    b1 = p['b1'] + b_fb + b_site                            # (1, 256)

    bn2s, bn2b = p['bn2']
    w2 = bn2s.T * p['w2']                                   # (256, 128)
    b2 = bn2b @ p['w2'] + p['b2']                           # (1, 128)

    bn3s, bn3b = p['bn3']
    w3_eff = bn3s.T * p['w3']                               # (128, 16)
    b3_eff = bn3b @ p['w3'] + p['b3']                       # (1, 16)
    w3 = jnp.zeros((H2, H3PAD), f32).at[:, :H3].set(w3_eff)
    b3 = jnp.zeros((1, H3PAD), f32).at[:, :H3].set(b3_eff)

    bn4s, bn4b = p['bn4']
    wxy = bn4s.T * p['wxy']                                 # (16, 2)
    bxy = bn4b @ p['wxy'] + p['bxy']                        # (1, 2)
    wfl = bn4s.T * p['wfl']                                 # (16, 1)
    bfl = bn4b @ p['wfl'] + p['bfl']                        # (1, 1)

    w_head = jnp.zeros((H3PAD, HEAD_PAD), f32)
    w_head = w_head.at[:H3, :2].set(wxy).at[:H3, 2:3].set(wfl)
    b_head = jnp.zeros((1, HEAD_PAD), f32)
    b_head = b_head.at[:, :2].set(bxy).at[:, 2:3].set(bfl)

    bf16 = jnp.bfloat16
    return {
        'w_site': w_site.astype(bf16), 'w_feat': w_feat.astype(bf16), 'b1': b1,
        'w2': w2.astype(bf16), 'b2': b2,
        'w3': w3.astype(bf16), 'b3': b3,
        'w_head': w_head.astype(bf16), 'b_head': b_head,
    }


def fixed_bssid_mlp(fp, site_id, fixed_bssid_feats):
    B = site_id.shape[0]

    # Batch tile: up to MAX_TB rows per grid step (pad batch to a multiple).
    TB = min(MAX_TB, _round_up(B, 8))
    Bp = _round_up(B, TB)

    site_ids2 = site_id.reshape(-1, 1).astype(jnp.int32)
    feats = fixed_bssid_feats.astype(jnp.float32)
    if Bp != B:
        site_ids2 = jnp.pad(site_ids2, ((0, Bp - B), (0, 0)))
        feats = jnp.pad(feats, ((0, Bp - B), (0, 0)))

    grid = (Bp // TB,)

    # Activation blocks march with the grid; weight blocks are constant (resident).
    in_specs = [
        pl.BlockSpec((TB, 1), lambda i: (i, 0)),           # site_id
        pl.BlockSpec((TB, NUM_FEATS), lambda i: (i, 0)),   # feats
        pl.BlockSpec((SITE_SIZE, H1), lambda i: (0, 0)),   # w_site
        pl.BlockSpec((NUM_FEATS, H1), lambda i: (0, 0)),   # w_feat
        pl.BlockSpec((1, H1), lambda i: (0, 0)),           # b1
        pl.BlockSpec((H1, H2), lambda i: (0, 0)),          # w2
        pl.BlockSpec((1, H2), lambda i: (0, 0)),           # b2
        pl.BlockSpec((H2, H3PAD), lambda i: (0, 0)),       # w3 (padded)
        pl.BlockSpec((1, H3PAD), lambda i: (0, 0)),        # b3 (padded)
        pl.BlockSpec((H3PAD, HEAD_PAD), lambda i: (0, 0)), # fused head weights
        pl.BlockSpec((1, HEAD_PAD), lambda i: (0, 0)),     # fused head bias
    ]
    out_spec = pl.BlockSpec((TB, HEAD_PAD), lambda i: (i, 0))

    flops_per_row = 2 * (SITE_SIZE * H1 + NUM_FEATS * H1
                         + H1 * H2 + H2 * H3PAD + H3PAD * HEAD_PAD)
    weight_bytes = (2 * (SITE_SIZE * H1 + NUM_FEATS * H1
                         + H1 * H2 + H2 * H3PAD + H3PAD * HEAD_PAD)
                    + 4 * (H1 + H2 + H3PAD + HEAD_PAD))
    bytes_per_row = 4 + NUM_FEATS * 4 + HEAD_PAD * 4
    cost = pl.CostEstimate(flops=flops_per_row * Bp,
                           transcendentals=0,
                           bytes_accessed=bytes_per_row * Bp + weight_bytes)

    out = pl.pallas_call(
        _mlp_kernel,
        out_shape=jax.ShapeDtypeStruct((Bp, HEAD_PAD), jnp.float32),
        grid_spec=pltpu.PrefetchScalarGridSpec(
            num_scalar_prefetch=0,
            grid=grid,
            in_specs=in_specs,
            out_specs=out_spec,
        ),
        compiler_params=pltpu.CompilerParams(
            dimension_semantics=("parallel",),
            vmem_limit_bytes=32 * 1024 * 1024,
        ),
        cost_estimate=cost,
    )(site_ids2, feats,
      fp['w_site'], fp['w_feat'], fp['b1'],
      fp['w2'], fp['b2'], fp['w3'], fp['b3'],
      fp['w_head'], fp['b_head'])

    # Slice the lane-dense fused output: cols [0:2]=xy, col 2=floor (already ReLU'd).
    xy = out[:B, :2]
    floor = out[:B, 2]
    return {'xy': xy, 'floor': floor}


if __name__ == "__main__":
    key = jax.random.PRNGKey(0)
    kp, ksite, kfeat = jax.random.split(key, 3)
    params = init_params(kp)
    folded = fold_params(params)

    B = 8
    site_id = jax.random.randint(ksite, (B,), 0, SITE_SIZE, dtype=jnp.int32)
    fixed_bssid_feats = jax.random.normal(kfeat, (B, NUM_FEATS), dtype=jnp.float32)

    fwd = jax.jit(functools.partial(fixed_bssid_mlp, folded))
    out = jax.block_until_ready(fwd(site_id, fixed_bssid_feats))

    assert out['xy'].shape == (B, 2) and out['xy'].dtype == jnp.float32
    assert out['floor'].shape == (B,) and out['floor'].dtype == jnp.float32
    assert bool(jnp.all(jnp.isfinite(out['xy']))) and bool(jnp.all(jnp.isfinite(out['floor'])))
    print("KERNEL_OK")
</pallas_src>

<mosaic_0001>
module attributes {stable_mosaic.version = 11 : i64} {
  func.func @_mlp_kernel(%arg0: i32, %arg1: memref<8x1xi32, #tpu.memory_space<vmem>>, %arg2: memref<8x20xf32, #tpu.memory_space<vmem>>, %arg3: memref<24x256xbf16, #tpu.memory_space<vmem>>, %arg4: memref<20x256xbf16, #tpu.memory_space<vmem>>, %arg5: memref<1x256xf32, #tpu.memory_space<vmem>>, %arg6: memref<256x128xbf16, #tpu.memory_space<vmem>>, %arg7: memref<1x128xf32, #tpu.memory_space<vmem>>, %arg8: memref<128x128xbf16, #tpu.memory_space<vmem>>, %arg9: memref<1x128xf32, #tpu.memory_space<vmem>>, %arg10: memref<128x128xbf16, #tpu.memory_space<vmem>>, %arg11: memref<1x128xf32, #tpu.memory_space<vmem>>, %arg12: memref<8x128xf32, #tpu.memory_space<vmem>>) attributes {dimension_semantics = [#tpu.dimension_semantics<parallel>], iteration_bounds = array<i64: 1>, scalar_prefetch = 0 : i64, scratch_operands = 0 : i64, tpu.core_type = #tpu.core_type<tc>, window_params = [{transform_indices = @transform_0, window_bounds = array<i64: 8, 1>}, {transform_indices = @transform_1, window_bounds = array<i64: 8, 20>}, {pipeline_mode = #tpu.pipeline_mode<synchronous>, transform_indices = @transform_2, window_bounds = array<i64: 24, 256>}, {pipeline_mode = #tpu.pipeline_mode<synchronous>, transform_indices = @transform_3, window_bounds = array<i64: 20, 256>}, {pipeline_mode = #tpu.pipeline_mode<synchronous>, transform_indices = @transform_4, window_bounds = array<i64: 1, 256>}, {pipeline_mode = #tpu.pipeline_mode<synchronous>, transform_indices = @transform_5, window_bounds = array<i64: 256, 128>}, {pipeline_mode = #tpu.pipeline_mode<synchronous>, transform_indices = @transform_6, window_bounds = array<i64: 1, 128>}, {pipeline_mode = #tpu.pipeline_mode<synchronous>, transform_indices = @transform_7, window_bounds = array<i64: 128, 128>}, {pipeline_mode = #tpu.pipeline_mode<synchronous>, transform_indices = @transform_8, window_bounds = array<i64: 1, 128>}, {pipeline_mode = #tpu.pipeline_mode<synchronous>, transform_indices = @transform_9, window_bounds = array<i64: 128, 128>}, {pipeline_mode = #tpu.pipeline_mode<synchronous>, transform_indices = @transform_10, window_bounds = array<i64: 1, 128>}, {transform_indices = @transform_11, window_bounds = array<i64: 8, 128>}]} {
    %c0 = arith.constant 0 : index
    %c0_0 = arith.constant 0 : index
    %0 = vector.load %arg1[%c0, %c0_0] : memref<8x1xi32, #tpu.memory_space<vmem>>, vector<8x1xi32>
    %1 = tpu.iota {dimensions = array<i32: 1>} : vector<8x24xi32>
    %2 = vector.broadcast %0 : vector<8x1xi32> to vector<8x24xi32>
    %3 = arith.cmpi eq, %1, %2 : vector<8x24xi32>
    %4 = arith.extui %3 : vector<8x24xi1> to vector<8x24xi32>
    %5 = arith.sitofp %4 : vector<8x24xi32> to vector<8x24xf32>
    %6 = arith.truncf %5 : vector<8x24xf32> to vector<8x24xbf16>
    %c0_1 = arith.constant 0 : index
    %c0_2 = arith.constant 0 : index
    %7 = vector.load %arg2[%c0_1, %c0_2] : memref<8x20xf32, #tpu.memory_space<vmem>>, vector<8x20xf32>
    %8 = arith.truncf %7 : vector<8x20xf32> to vector<8x20xbf16>
    %c0_3 = arith.constant 0 : index
    %c0_4 = arith.constant 0 : index
    %9 = vector.load %arg3[%c0_3, %c0_4] : memref<24x256xbf16, #tpu.memory_space<vmem>>, vector<24x256xbf16>
    %cst = arith.constant dense<0.000000e+00> : vector<8x256xf32>
    %10 = tpu.matmul %6, %9, %cst {dimension_numbers = #tpu.dot_dimension_numbers<[1], [0], [0], [1], [0, 0, 1, 1], [], []>} : vector<8x24xbf16>, vector<24x256xbf16>, vector<8x256xf32> -> vector<8x256xf32>
    %c0_5 = arith.constant 0 : index
    %c0_6 = arith.constant 0 : index
    %11 = vector.load %arg4[%c0_5, %c0_6] : memref<20x256xbf16, #tpu.memory_space<vmem>>, vector<20x256xbf16>
    %cst_7 = arith.constant dense<0.000000e+00> : vector<8x256xf32>
    %12 = tpu.matmul %8, %11, %cst_7 {dimension_numbers = #tpu.dot_dimension_numbers<[1], [0], [0], [1], [0, 0, 1, 1], [], []>} : vector<8x20xbf16>, vector<20x256xbf16>, vector<8x256xf32> -> vector<8x256xf32>
    %13 = arith.addf %10, %12 : vector<8x256xf32>
    %c0_8 = arith.constant 0 : index
    %c0_9 = arith.constant 0 : index
    %14 = vector.load %arg5[%c0_8, %c0_9] : memref<1x256xf32, #tpu.memory_space<vmem>>, vector<1x256xf32>
    %15 = vector.broadcast %14 : vector<1x256xf32> to vector<8x256xf32>
    %16 = arith.addf %13, %15 : vector<8x256xf32>
    %cst_10 = arith.constant 0.000000e+00 : f32
    %17 = vector.broadcast %cst_10 : f32 to vector<8x256xf32>
    %18 = arith.maximumf %16, %17 : vector<8x256xf32>
    %19 = arith.truncf %18 : vector<8x256xf32> to vector<8x256xbf16>
    %c0_11 = arith.constant 0 : index
    %c0_12 = arith.constant 0 : index
    %20 = vector.load %arg6[%c0_11, %c0_12] : memref<256x128xbf16, #tpu.memory_space<vmem>>, vector<256x128xbf16>
    %cst_13 = arith.constant dense<0.000000e+00> : vector<8x128xf32>
    %21 = tpu.matmul %19, %20, %cst_13 {dimension_numbers = #tpu.dot_dimension_numbers<[1], [0], [0], [1], [0, 0, 1, 1], [], []>} : vector<8x256xbf16>, vector<256x128xbf16>, vector<8x128xf32> -> vector<8x128xf32>
    %c0_14 = arith.constant 0 : index
    %c0_15 = arith.constant 0 : index
    %22 = vector.load %arg7[%c0_14, %c0_15] : memref<1x128xf32, #tpu.memory_space<vmem>>, vector<1x128xf32>
    %23 = vector.broadcast %22 : vector<1x128xf32> to vector<8x128xf32>
    %24 = arith.addf %21, %23 : vector<8x128xf32>
    %cst_16 = arith.constant 0.000000e+00 : f32
    %25 = vector.broadcast %cst_16 : f32 to vector<8x128xf32>
    %26 = arith.maximumf %24, %25 : vector<8x128xf32>
    %27 = arith.truncf %26 : vector<8x128xf32> to vector<8x128xbf16>
    %c0_17 = arith.constant 0 : index
    %c0_18 = arith.constant 0 : index
    %28 = vector.load %arg8[%c0_17, %c0_18] : memref<128x128xbf16, #tpu.memory_space<vmem>>, vector<128x128xbf16>
    %cst_19 = arith.constant dense<0.000000e+00> : vector<8x128xf32>
    %29 = tpu.matmul %27, %28, %cst_19 {dimension_numbers = #tpu.dot_dimension_numbers<[1], [0], [0], [1], [0, 0, 1, 1], [], []>} : vector<8x128xbf16>, vector<128x128xbf16>, vector<8x128xf32> -> vector<8x128xf32>
    %c0_20 = arith.constant 0 : index
    %c0_21 = arith.constant 0 : index
    %30 = vector.load %arg9[%c0_20, %c0_21] : memref<1x128xf32, #tpu.memory_space<vmem>>, vector<1x128xf32>
    %31 = vector.broadcast %30 : vector<1x128xf32> to vector<8x128xf32>
    %32 = arith.addf %29, %31 : vector<8x128xf32>
    %cst_22 = arith.constant 0.000000e+00 : f32
    %33 = vector.broadcast %cst_22 : f32 to vector<8x128xf32>
    %34 = arith.maximumf %32, %33 : vector<8x128xf32>
    %35 = arith.truncf %34 : vector<8x128xf32> to vector<8x128xbf16>
    %c0_23 = arith.constant 0 : index
    %c0_24 = arith.constant 0 : index
    %36 = vector.load %arg10[%c0_23, %c0_24] : memref<128x128xbf16, #tpu.memory_space<vmem>>, vector<128x128xbf16>
    %cst_25 = arith.constant dense<0.000000e+00> : vector<8x128xf32>
    %37 = tpu.matmul %35, %36, %cst_25 {dimension_numbers = #tpu.dot_dimension_numbers<[1], [0], [0], [1], [0, 0, 1, 1], [], []>} : vector<8x128xbf16>, vector<128x128xbf16>, vector<8x128xf32> -> vector<8x128xf32>
    %c0_26 = arith.constant 0 : index
    %c0_27 = arith.constant 0 : index
    %38 = vector.load %arg11[%c0_26, %c0_27] : memref<1x128xf32, #tpu.memory_space<vmem>>, vector<1x128xf32>
    %39 = vector.broadcast %38 : vector<1x128xf32> to vector<8x128xf32>
    %40 = arith.addf %37, %39 : vector<8x128xf32>
    %41 = tpu.iota {dimensions = array<i32: 1>} : vector<8x128xi32>
    %c2_i32 = arith.constant 2 : i32
    %42 = vector.broadcast %c2_i32 : i32 to vector<8x128xi32>
    %43 = arith.cmpi sge, %41, %42 : vector<8x128xi32>
    %cst_28 = arith.constant 0.000000e+00 : f32
    %44 = vector.broadcast %cst_28 : f32 to vector<8x128xf32>
    %45 = arith.maximumf %40, %44 : vector<8x128xf32>
    %46 = arith.select %43, %45, %40 : vector<8x128xi1>, vector<8x128xf32>
    %c0_29 = arith.constant 0 : index
    %c0_30 = arith.constant 0 : index
    %47 = vector.load %arg12[%c0_29, %c0_30] : memref<8x128xf32, #tpu.memory_space<vmem>>, vector<8x128xf32>
    tpu.vector_store %arg12[%c0_29, %c0_30], %46 {strides = array<i32>} : memref<8x128xf32, #tpu.memory_space<vmem>>, vector<8x128xf32>,
    return
  }
  func.func @transform_0(%arg0: i32) -> (i32, i32) {
    %c0_i32 = arith.constant 0 : i32
    %c0_i32_0 = arith.constant 0 : i32
    return %arg0, %c0_i32 : i32, i32
  }
  func.func @transform_1(%arg0: i32) -> (i32, i32) {
    %c0_i32 = arith.constant 0 : i32
    %c0_i32_0 = arith.constant 0 : i32
    return %arg0, %c0_i32 : i32, i32
  }
  func.func @transform_2(%arg0: i32) -> (i32, i32) {
    %c0_i32 = arith.constant 0 : i32
    %c0_i32_0 = arith.constant 0 : i32
    %c0_i32_1 = arith.constant 0 : i32
    return %c0_i32, %c0_i32_0 : i32, i32
  }
  func.func @transform_3(%arg0: i32) -> (i32, i32) {
    %c0_i32 = arith.constant 0 : i32
    %c0_i32_0 = arith.constant 0 : i32
    %c0_i32_1 = arith.constant 0 : i32
    return %c0_i32, %c0_i32_0 : i32, i32
  }
  func.func @transform_4(%arg0: i32) -> (i32, i32) {
    %c0_i32 = arith.constant 0 : i32
    %c0_i32_0 = arith.constant 0 : i32
    %c0_i32_1 = arith.constant 0 : i32
    return %c0_i32, %c0_i32_0 : i32, i32
  }
  func.func @transform_5(%arg0: i32) -> (i32, i32) {
    %c0_i32 = arith.constant 0 : i32
    %c0_i32_0 = arith.constant 0 : i32
    %c0_i32_1 = arith.constant 0 : i32
    return %c0_i32, %c0_i32_0 : i32, i32
  }
  func.func @transform_6(%arg0: i32) -> (i32, i32) {
    %c0_i32 = arith.constant 0 : i32
    %c0_i32_0 = arith.constant 0 : i32
    %c0_i32_1 = arith.constant 0 : i32
    return %c0_i32, %c0_i32_0 : i32, i32
  }
  func.func @transform_7(%arg0: i32) -> (i32, i32) {
    %c0_i32 = arith.constant 0 : i32
    %c0_i32_0 = arith.constant 0 : i32
    %c0_i32_1 = arith.constant 0 : i32
    return %c0_i32, %c0_i32_0 : i32, i32
  }
  func.func @transform_8(%arg0: i32) -> (i32, i32) {
    %c0_i32 = arith.constant 0 : i32
    %c0_i32_0 = arith.constant 0 : i32
    %c0_i32_1 = arith.constant 0 : i32
    return %c0_i32, %c0_i32_0 : i32, i32
  }
  func.func @transform_9(%arg0: i32) -> (i32, i32) {
    %c0_i32 = arith.constant 0 : i32
    %c0_i32_0 = arith.constant 0 : i32
    %c0_i32_1 = arith.constant 0 : i32
    return %c0_i32, %c0_i32_0 : i32, i32
  }
  func.func @transform_10(%arg0: i32) -> (i32, i32) {
    %c0_i32 = arith.constant 0 : i32
    %c0_i32_0 = arith.constant 0 : i32
    %c0_i32_1 = arith.constant 0 : i32
    return %c0_i32, %c0_i32_0 : i32, i32
  }
  func.func @transform_11(%arg0: i32) -> (i32, i32) {
    %c0_i32 = arith.constant 0 : i32
    %c0_i32_0 = arith.constant 0 : i32
    return %arg0, %c0_i32 : i32, i32
  }
}

</mosaic_0001>

<llo_original>
// kernel: fixed_bssid_mlp.1
$region0: #{fixed_bssid_mlp.1}
  #allocation0 [shape = 'u32[]', space=smem, size = 0x4, offset = 0x4, fixed_abs, tag = 'smem constant byte address 0x4 - core index']
  #allocation1 [shape = 'u32[72,128]{1,0:T(1,128)}', space=vmem, size = 0x9000, scoped, tag = 'internal scratch']
  %s0 = inlined_call_operand.vmem [shape: s32[8,1], index: 0, kind: input, shape index: {}]
  %s1 = inlined_call_operand.vmem [shape: f32[8,20], index: 1, kind: input, shape index: {}]
  %s2 = inlined_call_operand.hbm [shape: bf16[24,256], index: 2, kind: input, shape index: {}]
  %s3 = inlined_call_operand.hbm [shape: bf16[20,256], index: 3, kind: input, shape index: {}]
  %s4 = inlined_call_operand.vmem [shape: f32[1,256], index: 4, kind: input, shape index: {}]
  %s5 = inlined_call_operand.hbm [shape: bf16[256,128], index: 5, kind: input, shape index: {}]
  %s6 = inlined_call_operand.vmem [shape: f32[1,128], index: 6, kind: input, shape index: {}]
  %s7 = inlined_call_operand.hbm [shape: bf16[128,128], index: 7, kind: input, shape index: {}]
  %s8 = inlined_call_operand.vmem [shape: f32[1,128], index: 8, kind: input, shape index: {}]
  %s9 = inlined_call_operand.hbm [shape: bf16[128,128], index: 9, kind: input, shape index: {}]
  %s10 = inlined_call_operand.vmem [shape: f32[1,128], index: 10, kind: input, shape index: {}]
  %s11 = inlined_call_operand.vmem [shape: f32[8,128], index: 11, kind: output, shape index: {}]
  %s12 = sld [smem:[#allocation0]]
  $region74: #{fixed_bssid_mlp.1} parent=0
    _
  %s14 = ssub.s32 1, %s12
  %s15 = scalar_select 0, %s14, %s12
  $region1: #{fixed_bssid_mlp.1} parent=0
    #allocation2 [shape = 'u8[12288]{0}', space=vmem, size = 0x3000, scoped, tag = 'input window, operand 2, single buffered']
    #allocation3 [shape = 's32[1]{0}', space=sflag, size = 0x4, scoped, tag = 'scoped memory for fixed_bssid_mlp.1']
    #allocation4 [shape = 'u8[12288]{0}', space=vmem, size = 0x3000, scoped, tag = 'input window, operand 3, single buffered']
    #allocation5 [shape = 's32[1]{0}', space=sflag, size = 0x4, scoped, tag = 'scoped memory for fixed_bssid_mlp.1']
    #allocation6 [shape = 'u8[65536]{0}', space=vmem, size = 0x10000, scoped, tag = 'input window, operand 5, single buffered']
    #allocation7 [shape = 'u8[32768]{0}', space=vmem, size = 0x8000, scoped, tag = 'input window, operand 7, single buffered']
    #allocation8 [shape = 's32[1]{0}', space=sflag, size = 0x4, scoped, tag = 'scoped memory for fixed_bssid_mlp.1']
    #allocation9 [shape = 'u8[32768]{0}', space=vmem, size = 0x8000, scoped, tag = 'input window, operand 9, single buffered']
    %16 = vsyncpa [#allocation3], 0
    %17 = vsyncpa [#allocation5], 0
    %18 = vsyncpa [#allocation8], 0
    // Predicated region
    $region2: #{fixed_bssid_mlp.1} parent=1 // pred_check
      _
    $region3: #{fixed_bssid_mlp.1} parent=1 // pred_check_branch
      %20 = sbr.rel (0) target = $region5
    $region4: #{fixed_bssid_mlp.1} parent=1 // pred_region
      _
    $region5: #{fixed_bssid_mlp.1} parent=1 // pred_fallthru
      _
    // Predicated region
    $region6: #{fixed_bssid_mlp.1} parent=1 // pred_check
      _
    $region7: #{fixed_bssid_mlp.1} parent=1 // pred_check_branch
      %22 = sbr.rel (0) target = $region9
    $region8: #{fixed_bssid_mlp.1} parent=1 // pred_region
      _
    $region9: #{fixed_bssid_mlp.1} parent=1 // pred_fallthru
      _
    // Predicated region
    $region10: #{fixed_bssid_mlp.1} parent=1 // pred_check
      _
    $region11: #{fixed_bssid_mlp.1} parent=1 // pred_check_branch
      %24 = sbr.rel (0) target = $region13
    $region12: #{fixed_bssid_mlp.1} parent=1 // pred_region
      %26 = vsyncadd [#allocation3], 0
      %s27 = sshll.u32 %s2, 4
      %s28 = int_to_ptr.hbm [resolvable:$true] %s27
      %s29 = sshll.u32 [#allocation2], 4
      %s30 = int_to_ptr.vmem [resolvable:$true] %s29
      %35 = dma.hbm_to_vmem [thread:$0]  %s28, 384, %s30, [#allocation3], 128, 128, 8
    $region13: #{fixed_bssid_mlp.1} parent=1 // pred_fallthru
      _
    // Predicated region
    $region14: #{fixed_bssid_mlp.1} parent=1 // pred_check
      _
    $region15: #{fixed_bssid_mlp.1} parent=1 // pred_check_branch
      %37 = sbr.rel (0) target = $region17
    $region16: #{fixed_bssid_mlp.1} parent=1 // pred_region
      %39 = vsyncadd [#allocation5], 0
      %s40 = sshll.u32 %s3, 4
      %s41 = int_to_ptr.hbm [resolvable:$true] %s40
      %s42 = sshll.u32 [#allocation4], 4
      %s43 = int_to_ptr.vmem [resolvable:$true] %s42
      %48 = dma.hbm_to_vmem [thread:$0]  %s41, 384, %s43, [#allocation5], 128, 128, 8
    $region17: #{fixed_bssid_mlp.1} parent=1 // pred_fallthru
      _
    // Predicated region
    $region18: #{fixed_bssid_mlp.1} parent=1 // pred_check
      _
    $region19: #{fixed_bssid_mlp.1} parent=1 // pred_check_branch
      %50 = sbr.rel (0) target = $region21
    $region20: #{fixed_bssid_mlp.1} parent=1 // pred_region
      _
    $region21: #{fixed_bssid_mlp.1} parent=1 // pred_fallthru
      _
    // Predicated region
    $region22: #{fixed_bssid_mlp.1} parent=1 // pred_check
      _
    $region23: #{fixed_bssid_mlp.1} parent=1 // pred_check_branch
      %52 = sbr.rel (0) target = $region25
    $region24: #{fixed_bssid_mlp.1} parent=1 // pred_region
      %54 = vsyncadd [#allocation5], 0
      %s55 = sshll.u32 %s5, 4
      %s56 = int_to_ptr.hbm [resolvable:$true] %s55
      %s57 = sshll.u32 [#allocation6], 4
      %s58 = int_to_ptr.vmem [resolvable:$true] %s57
      %63 = dma.hbm_to_vmem [thread:$0]  %s56, 2048, %s58, [#allocation5], 64, 64, 4
    $region25: #{fixed_bssid_mlp.1} parent=1 // pred_fallthru
      _
    // Predicated region
    $region26: #{fixed_bssid_mlp.1} parent=1 // pred_check
      _
    $region27: #{fixed_bssid_mlp.1} parent=1 // pred_check_branch
      %65 = sbr.rel (0) target = $region29
    $region28: #{fixed_bssid_mlp.1} parent=1 // pred_region
      _
    $region29: #{fixed_bssid_mlp.1} parent=1 // pred_fallthru
      _
    // Predicated region
    $region30: #{fixed_bssid_mlp.1} parent=1 // pred_check
      _
    $region31: #{fixed_bssid_mlp.1} parent=1 // pred_check_branch
      %67 = sbr.rel (0) target = $region33
    $region32: #{fixed_bssid_mlp.1} parent=1 // pred_region
      %69 = vsyncadd [#allocation8], 0
      %s70 = sshll.u32 %s7, 4
      %s71 = int_to_ptr.hbm [resolvable:$true] %s70
      %s72 = sshll.u32 [#allocation7], 4
      %s73 = int_to_ptr.vmem [resolvable:$true] %s72
      %78 = dma.hbm_to_vmem [thread:$0]  %s71, 1024, %s73, [#allocation8], 64, 64, 4
    $region33: #{fixed_bssid_mlp.1} parent=1 // pred_fallthru
      _
    // Predicated region
    $region34: #{fixed_bssid_mlp.1} parent=1 // pred_check
      _
    $region35: #{fixed_bssid_mlp.1} parent=1 // pred_check_branch
      %80 = sbr.rel (0) target = $region37
    $region36: #{fixed_bssid_mlp.1} parent=1 // pred_region
      _
    $region37: #{fixed_bssid_mlp.1} parent=1 // pred_fallthru
      _
    // Predicated region
    $region38: #{fixed_bssid_mlp.1} parent=1 // pred_check
      _
    $region39: #{fixed_bssid_mlp.1} parent=1 // pred_check_branch
      %82 = sbr.rel (0) target = $region41
    $region40: #{fixed_bssid_mlp.1} parent=1 // pred_region
      %84 = vsyncadd [#allocation8], 0
      %s85 = sshll.u32 %s9, 4
      %s86 = int_to_ptr.hbm [resolvable:$true] %s85
      %s87 = sshll.u32 [#allocation9], 4
      %s88 = int_to_ptr.vmem [resolvable:$true] %s87
      %93 = dma.hbm_to_vmem [thread:$0]  %s86, 1024, %s88, [#allocation8], 64, 64, 4
    $region41: #{fixed_bssid_mlp.1} parent=1 // pred_fallthru
      _
    // Predicated region
    $region42: #{fixed_bssid_mlp.1} parent=1 // pred_check
      _
    $region43: #{fixed_bssid_mlp.1} parent=1 // pred_check_branch
      %95 = sbr.rel (0) target = $region45
    $region44: #{fixed_bssid_mlp.1} parent=1 // pred_region
      _
    $region45: #{fixed_bssid_mlp.1} parent=1 // pred_fallthru
      _
    // Predicated region
    $region46: #{fixed_bssid_mlp.1} parent=1 // pred_check
      _
    $region47: #{fixed_bssid_mlp.1} parent=1 // pred_check_branch
      %97 = sbr.rel (0) target = $region49
    $region48: #{fixed_bssid_mlp.1} parent=1 // pred_region
      %99 = dma.done [#allocation3], 384
    $region49: #{fixed_bssid_mlp.1} parent=1 // pred_fallthru
      _
    // Predicated region
    $region50: #{fixed_bssid_mlp.1} parent=1 // pred_check
      _
    $region51: #{fixed_bssid_mlp.1} parent=1 // pred_check_branch
      %101 = sbr.rel (0) target = $region53
    $region52: #{fixed_bssid_mlp.1} parent=1 // pred_region
      %103 = dma.done [#allocation5], 384
    $region53: #{fixed_bssid_mlp.1} parent=1 // pred_fallthru
      _
    // Predicated region
    $region54: #{fixed_bssid_mlp.1} parent=1 // pred_check
      _
    $region55: #{fixed_bssid_mlp.1} parent=1 // pred_check_branch
      %105 = sbr.rel (0) target = $region57
    $region56: #{fixed_bssid_mlp.1} parent=1 // pred_region
      %107 = dma.done [#allocation5], 2048
    $region57: #{fixed_bssid_mlp.1} parent=1 // pred_fallthru
      _
    // Predicated region
    $region58: #{fixed_bssid_mlp.1} parent=1 // pred_check
      _
    $region59: #{fixed_bssid_mlp.1} parent=1 // pred_check_branch
      %109 = sbr.rel (0) target = $region61
    $region60: #{fixed_bssid_mlp.1} parent=1 // pred_region
      %111 = dma.done [#allocation8], 1024
    $region61: #{fixed_bssid_mlp.1} parent=1 // pred_fallthru
      _
    // Predicated region
    $region62: #{fixed_bssid_mlp.1} parent=1 // pred_check
      _
    $region63: #{fixed_bssid_mlp.1} parent=1 // pred_check_branch
      %113 = sbr.rel (0) target = $region65
    $region64: #{fixed_bssid_mlp.1} parent=1 // pred_region
      %115 = dma.done [#allocation8], 1024
    $region65: #{fixed_bssid_mlp.1} parent=1 // pred_fallthru
      _
    %v117 = vld [vmem:[%s0] sm:$0xff]
    %v118 = vlaneseq
    %v119 = vand.u32 %v118, 127
    %120 = vset.pattern.permute.xlu0 0
    %121 = vperm.xlu0 %120, %v117
    %v122 = vpop.permute.xlu0 %121
    %vm123 = vcmp.eq.s32.totalorder %v119, %v122
    %v124 = vsel %vm123, 1, 0
    %v125 = vcvt.s32.f32 %v124
    %v126 = vpack.c.bf16 %v125, %v125
    %v127 = vld [vmem:[%s1] sm:$0xff]
    %v128 = vpack.c.bf16 %v127, %v127
    %v129 = vld [vmem:[#allocation2] sm:$0xff]
    %v130 = vld [vmem:[#allocation2 + $0x8] sm:$0xff]
    %v131 = vld [vmem:[#allocation2 + $0x10] sm:$0xff]
    %v132 = vld [vmem:[#allocation4] sm:$0xff]
    %v133 = vld [vmem:[#allocation4 + $0x8] sm:$0xff]
    %v134 = vld [vmem:[#allocation4 + $0x10] sm:$0x33]
    %v138 = vunpack.c.l.b16 %v132
    %v139 = vunpack.c.h.b16 %v132
    %v140 = vunpack.c.l.b16 %v133
    %v141 = vunpack.c.h.b16 %v133
    %v142 = vunpack.c.l.b16 %v134
    %v143 = vunpack.c.h.b16 %v134
    %v144 = vpack.c.b16 %v140, %v138
    %v145 = vpack.c.b16 %v141, %v139
    %v146 = vpack.c.b16 %v142, %v142
    %v147 = vpack.c.b16 %v143, %v143
    %vm150 = vcmask 162816
    %v152 = vsel %vm150, %v128, 0
    %vm154 = vcmask 1041408
    %v156 = vsel %vm154, %v146, 0
    %v159 = vsel %vm154, %v147, 0
    %161 = vmatpush.bf16.msra.mxu0 0
    %162 = vmatpush.bf16.msra.mxu0 0
    %163 = vmatpush.bf16.msra.mxu0 0
    %164 = vmatpush.bf16.msra.mxu0 0
    %165 = vmatpush.bf16.msra.mxu0 0
    %166 = vmatpush.bf16.msra.mxu0 0
    %167 = vmatpush.bf16.msra.mxu0 %v156
    %168 = vmatpush.bf16.msra.mxu0 %v144
    %169 = vmatmul.bf16.gmra.mxu0 %v152
    %v170 = vpop.f32.mrf.mxu0
    %v171 = vadd.f32 0.0, %v170
    %v172 = vpop.f32.mrf.mxu0
    %173 = vdwg.mxu0
    %174 = vmatpush.bf16.msra.mxu0 0
    %175 = vmatpush.bf16.msra.mxu0 0
    %176 = vmatpush.bf16.msra.mxu0 0
    %177 = vmatpush.bf16.msra.mxu0 0
    %178 = vmatpush.bf16.msra.mxu0 0
    %179 = vmatpush.bf16.msra.mxu0 0
    %180 = vmatpush.bf16.msra.mxu0 %v159
    %181 = vmatpush.bf16.msra.mxu0 %v145
    %182 = vmatmul.bf16.gmra.mxu0 %v152
    %v183 = vpop.f32.mrf.mxu0
    %v184 = vadd.f32 0.0, %v183
    %v185 = vpop.f32.mrf.mxu0
    %186 = vdwg.mxu0
    %v190 = vunpack.c.l.b16 %v129
    %v191 = vunpack.c.h.b16 %v129
    %v192 = vunpack.c.l.b16 %v130
    %v193 = vunpack.c.h.b16 %v130
    %v194 = vunpack.c.l.b16 %v131
    %v195 = vunpack.c.h.b16 %v131
    %v196 = vpack.c.b16 %v192, %v190
    %v197 = vpack.c.b16 %v193, %v191
    %v198 = vpack.c.b16 %v194, %v194
    %v199 = vpack.c.b16 %v195, %v195
    %vm202 = vcmask 195584
    %v204 = vsel %vm202, %v126, 0
    %vm206 = vcmask 1043456
    %v208 = vsel %vm206, %v198, 0
    %v211 = vsel %vm206, %v199, 0
    %213 = vmatpush.bf16.msra.mxu0 0
    %214 = vmatpush.bf16.msra.mxu0 0
    %215 = vmatpush.bf16.msra.mxu0 0
    %216 = vmatpush.bf16.msra.mxu0 0
    %217 = vmatpush.bf16.msra.mxu0 0
    %218 = vmatpush.bf16.msra.mxu0 0
    %219 = vmatpush.bf16.msra.mxu0 %v208
    %220 = vmatpush.bf16.msra.mxu0 %v196
    %221 = vmatmul.bf16.gmra.mxu0 %v204
    %v222 = vpop.f32.mrf.mxu0
    %v223 = vadd.f32 %v171, %v222
    %v224 = vpop.f32.mrf.mxu0
    %225 = vdwg.mxu0
    %226 = vmatpush.bf16.msra.mxu0 0
    %227 = vmatpush.bf16.msra.mxu0 0
    %228 = vmatpush.bf16.msra.mxu0 0
    %229 = vmatpush.bf16.msra.mxu0 0
    %230 = vmatpush.bf16.msra.mxu0 0
    %231 = vmatpush.bf16.msra.mxu0 0
    %232 = vmatpush.bf16.msra.mxu0 %v211
    %233 = vmatpush.bf16.msra.mxu0 %v197
    %234 = vmatmul.bf16.gmra.mxu0 %v204
    %v235 = vpop.f32.mrf.mxu0
    %v236 = vadd.f32 %v184, %v235
    %v237 = vpop.f32.mrf.mxu0
    %238 = vdwg.mxu0
    %v239 = vld [vmem:[%s4] sm:$0x3]
    %v241 = vperm.slane %v239, 0
    %v242 = vperm.slane %v239, 1
    %v245 = vadd.f32 %v223, %v241
    %v246 = vadd.f32 %v236, %v242
    %v247 = vmax.f32 %v245, 0.0
    %v248 = vmax.f32 %v246, 0.0
    %v249 = vpack.c.bf16 %v247, %v247
    %v250 = vpack.c.bf16 %v248, %v248
    %v251 = vld [vmem:[#allocation6] sm:$0xf]
    %v252 = vld [vmem:[#allocation6 + $0x4] sm:$0xf]
    %v253 = vld [vmem:[#allocation6 + $0x8] sm:$0xf]
    %v254 = vld [vmem:[#allocation6 + $0xc] sm:$0xf]
    %v255 = vld [vmem:[#allocation6 + $0x10] sm:$0xf]
    %v256 = vld [vmem:[#allocation6 + $0x14] sm:$0xf]
    %v257 = vld [vmem:[#allocation6 + $0x18] sm:$0xf]
    %v258 = vld [vmem:[#allocation6 + $0x1c] sm:$0xf]
    %v259 = vld [vmem:[#allocation6 + $0x20] sm:$0xf]
    %v260 = vld [vmem:[#allocation6 + $0x24] sm:$0xf]
    %v261 = vld [vmem:[#allocation6 + $0x28] sm:$0xf]
    %v262 = vld [vmem:[#allocation6 + $0x2c] sm:$0xf]
    %v263 = vld [vmem:[#allocation6 + $0x30] sm:$0xf]
    %v264 = vld [vmem:[#allocation6 + $0x34] sm:$0xf]
    %v265 = vld [vmem:[#allocation6 + $0x38] sm:$0xf]
    %v266 = vld [vmem:[#allocation6 + $0x3c] sm:$0xf]
    %v267 = vld [vmem:[#allocation6 + $0x40] sm:$0xf]
    %v268 = vld [vmem:[#allocation6 + $0x44] sm:$0xf]
    %v269 = vld [vmem:[#allocation6 + $0x48] sm:$0xf]
    %v270 = vld [vmem:[#allocation6 + $0x4c] sm:$0xf]
    %v271 = vld [vmem:[#allocation6 + $0x50] sm:$0xf]
    %v272 = vld [vmem:[#allocation6 + $0x54] sm:$0xf]
    %v273 = vld [vmem:[#allocation6 + $0x58] sm:$0xf]
    %v274 = vld [vmem:[#allocation6 + $0x5c] sm:$0xf]
    %v275 = vld [vmem:[#allocation6 + $0x60] sm:$0xf]
    %v276 = vld [vmem:[#allocation6 + $0x64] sm:$0xf]
    %v277 = vld [vmem:[#allocation6 + $0x68] sm:$0xf]
    %v278 = vld [vmem:[#allocation6 + $0x6c] sm:$0xf]
    %v279 = vld [vmem:[#allocation6 + $0x70] sm:$0xf]
    %v280 = vld [vmem:[#allocation6 + $0x74] sm:$0xf]
    %v281 = vld [vmem:[#allocation6 + $0x78] sm:$0xf]
    %v282 = vld [vmem:[#allocation6 + $0x7c] sm:$0xf]
    %v283 = vld [vmem:[%s6] sm:$0x1]
    %v285 = vperm.slane %v283, 0
    %v319 = vunpack.c.l.b16 %v251
    %v320 = vunpack.c.l.b16 %v252
    %v321 = vunpack.c.l.b16 %v253
    %v322 = vunpack.c.l.b16 %v254
    %v323 = vunpack.c.l.b16 %v255
    %v324 = vunpack.c.l.b16 %v256
    %v325 = vunpack.c.l.b16 %v257
    %v326 = vunpack.c.l.b16 %v258
    %v327 = vunpack.c.l.b16 %v259
    %v328 = vunpack.c.l.b16 %v260
    %v329 = vunpack.c.l.b16 %v261
    %v330 = vunpack.c.l.b16 %v262
    %v331 = vunpack.c.l.b16 %v263
    %v332 = vunpack.c.l.b16 %v264
    %v333 = vunpack.c.l.b16 %v265
    %v334 = vunpack.c.l.b16 %v266
    %v335 = vunpack.c.l.b16 %v267
    %v336 = vunpack.c.l.b16 %v268
    %v337 = vunpack.c.l.b16 %v269
    %v338 = vunpack.c.l.b16 %v270
    %v339 = vunpack.c.l.b16 %v271
    %v340 = vunpack.c.l.b16 %v272
    %v341 = vunpack.c.l.b16 %v273
    %v342 = vunpack.c.l.b16 %v274
    %v343 = vunpack.c.l.b16 %v275
    %v344 = vunpack.c.l.b16 %v276
    %v345 = vunpack.c.l.b16 %v277
    %v346 = vunpack.c.l.b16 %v278
    %v347 = vunpack.c.l.b16 %v279
    %v348 = vunpack.c.l.b16 %v280
    %v349 = vunpack.c.l.b16 %v281
    %v350 = vunpack.c.l.b16 %v282
    %v351 = vpack.c.b16 %v320, %v319
    %v352 = vpack.c.b16 %v322, %v321
    %v353 = vpack.c.b16 %v324, %v323
    %v354 = vpack.c.b16 %v326, %v325
    %v355 = vpack.c.b16 %v328, %v327
    %v356 = vpack.c.b16 %v330, %v329
    %v357 = vpack.c.b16 %v332, %v331
    %v358 = vpack.c.b16 %v334, %v333
    %v359 = vpack.c.b16 %v336, %v335
    %v360 = vpack.c.b16 %v338, %v337
    %v361 = vpack.c.b16 %v340, %v339
    %v362 = vpack.c.b16 %v342, %v341
    %v363 = vpack.c.b16 %v344, %v343
    %v364 = vpack.c.b16 %v346, %v345
    %v365 = vpack.c.b16 %v348, %v347
    %v366 = vpack.c.b16 %v350, %v349
    %383 = vmatpush.bf16.msra.mxu0 %v358
    %384 = vmatpush.bf16.msra.mxu0 %v357
    %385 = vmatpush.bf16.msra.mxu0 %v356
    %386 = vmatpush.bf16.msra.mxu0 %v355
    %387 = vmatpush.bf16.msra.mxu0 %v354
    %388 = vmatpush.bf16.msra.mxu0 %v353
    %389 = vmatpush.bf16.msra.mxu0 %v352
    %390 = vmatpush.bf16.msra.mxu0 %v351
    %391 = vmatmul.bf16.gmra.mxu0 %v249
    %v392 = vpop.f32.mrf.mxu0
    %v393 = vadd.f32 %v285, %v392
    %v394 = vpop.f32.mrf.mxu0
    %395 = vdwg.mxu0
    %396 = vmatpush.bf16.msra.mxu0 %v366
    %397 = vmatpush.bf16.msra.mxu0 %v365
    %398 = vmatpush.bf16.msra.mxu0 %v364
    %399 = vmatpush.bf16.msra.mxu0 %v363
    %400 = vmatpush.bf16.msra.mxu0 %v362
    %401 = vmatpush.bf16.msra.mxu0 %v361
    %402 = vmatpush.bf16.msra.mxu0 %v360
    %403 = vmatpush.bf16.msra.mxu0 %v359
    %404 = vmatmul.bf16.gmra.mxu0 %v250
    %v405 = vpop.f32.mrf.mxu0
    %v406 = vadd.f32 %v393, %v405
    %v407 = vpop.f32.mrf.mxu0
    %408 = vdwg.mxu0
    %v409 = vmax.f32 %v406, 0.0
    %v410 = vpack.c.bf16 %v409, %v409
    %v411 = vld [vmem:[#allocation7] sm:$0xf]
    %v412 = vld [vmem:[#allocation7 + $0x4] sm:$0xf]
    %v413 = vld [vmem:[#allocation7 + $0x8] sm:$0xf]
    %v414 = vld [vmem:[#allocation7 + $0xc] sm:$0xf]
    %v415 = vld [vmem:[#allocation7 + $0x10] sm:$0xf]
    %v416 = vld [vmem:[#allocation7 + $0x14] sm:$0xf]
    %v417 = vld [vmem:[#allocation7 + $0x18] sm:$0xf]
    %v418 = vld [vmem:[#allocation7 + $0x1c] sm:$0xf]
    %v419 = vld [vmem:[#allocation7 + $0x20] sm:$0xf]
    %v420 = vld [vmem:[#allocation7 + $0x24] sm:$0xf]
    %v421 = vld [vmem:[#allocation7 + $0x28] sm:$0xf]
    %v422 = vld [vmem:[#allocation7 + $0x2c] sm:$0xf]
    %v423 = vld [vmem:[#allocation7 + $0x30] sm:$0xf]
    %v424 = vld [vmem:[#allocation7 + $0x34] sm:$0xf]
    %v425 = vld [vmem:[#allocation7 + $0x38] sm:$0xf]
    %v426 = vld [vmem:[#allocation7 + $0x3c] sm:$0xf]
    %v427 = vld [vmem:[%s8] sm:$0x1]
    %v429 = vperm.slane %v427, 0
    %v447 = vunpack.c.l.b16 %v411
    %v448 = vunpack.c.l.b16 %v412
    %v449 = vunpack.c.l.b16 %v413
    %v450 = vunpack.c.l.b16 %v414
    %v451 = vunpack.c.l.b16 %v415
    %v452 = vunpack.c.l.b16 %v416
    %v453 = vunpack.c.l.b16 %v417
    %v454 = vunpack.c.l.b16 %v418
    %v455 = vunpack.c.l.b16 %v419
    %v456 = vunpack.c.l.b16 %v420
    %v457 = vunpack.c.l.b16 %v421
    %v458 = vunpack.c.l.b16 %v422
    %v459 = vunpack.c.l.b16 %v423
    %v460 = vunpack.c.l.b16 %v424
    %v461 = vunpack.c.l.b16 %v425
    %v462 = vunpack.c.l.b16 %v426
    %v463 = vpack.c.b16 %v448, %v447
    %v464 = vpack.c.b16 %v450, %v449
    %v465 = vpack.c.b16 %v452, %v451
    %v466 = vpack.c.b16 %v454, %v453
    %v467 = vpack.c.b16 %v456, %v455
    %v468 = vpack.c.b16 %v458, %v457
    %v469 = vpack.c.b16 %v460, %v459
    %v470 = vpack.c.b16 %v462, %v461
    %479 = vmatpush.bf16.msra.mxu0 %v470
    %480 = vmatpush.bf16.msra.mxu0 %v469
    %481 = vmatpush.bf16.msra.mxu0 %v468
    %482 = vmatpush.bf16.msra.mxu0 %v467
    %483 = vmatpush.bf16.msra.mxu0 %v466
    %484 = vmatpush.bf16.msra.mxu0 %v465
    %485 = vmatpush.bf16.msra.mxu0 %v464
    %486 = vmatpush.bf16.msra.mxu0 %v463
    %487 = vmatmul.bf16.gmra.mxu0 %v410
    %v488 = vpop.f32.mrf.mxu0
    %v489 = vadd.f32 %v429, %v488
    %v490 = vpop.f32.mrf.mxu0
    %491 = vdwg.mxu0
    %v492 = vmax.f32 %v489, 0.0
    %v493 = vpack.c.bf16 %v492, %v492
    %v494 = vld [vmem:[#allocation9] sm:$0xf]
    %v495 = vld [vmem:[#allocation9 + $0x4] sm:$0xf]
    %v496 = vld [vmem:[#allocation9 + $0x8] sm:$0xf]
    %v497 = vld [vmem:[#allocation9 + $0xc] sm:$0xf]
    %v498 = vld [vmem:[#allocation9 + $0x10] sm:$0xf]
    %v499 = vld [vmem:[#allocation9 + $0x14] sm:$0xf]
    %v500 = vld [vmem:[#allocation9 + $0x18] sm:$0xf]
    %v501 = vld [vmem:[#allocation9 + $0x1c] sm:$0xf]
    %v502 = vld [vmem:[#allocation9 + $0x20] sm:$0xf]
    %v503 = vld [vmem:[#allocation9 + $0x24] sm:$0xf]
    %v504 = vld [vmem:[#allocation9 + $0x28] sm:$0xf]
    %v505 = vld [vmem:[#allocation9 + $0x2c] sm:$0xf]
    %v506 = vld [vmem:[#allocation9 + $0x30] sm:$0xf]
    %v507 = vld [vmem:[#allocation9 + $0x34] sm:$0xf]
    %v508 = vld [vmem:[#allocation9 + $0x38] sm:$0xf]
    %v509 = vld [vmem:[#allocation9 + $0x3c] sm:$0xf]
    %v510 = vld [vmem:[%s10] sm:$0x1]
    %v512 = vperm.slane %v510, 0
    %v530 = vunpack.c.l.b16 %v494
    %v531 = vunpack.c.l.b16 %v495
    %v532 = vunpack.c.l.b16 %v496
    %v533 = vunpack.c.l.b16 %v497
    %v534 = vunpack.c.l.b16 %v498
    %v535 = vunpack.c.l.b16 %v499
    %v536 = vunpack.c.l.b16 %v500
    %v537 = vunpack.c.l.b16 %v501
    %v538 = vunpack.c.l.b16 %v502
    %v539 = vunpack.c.l.b16 %v503
    %v540 = vunpack.c.l.b16 %v504
    %v541 = vunpack.c.l.b16 %v505
    %v542 = vunpack.c.l.b16 %v506
    %v543 = vunpack.c.l.b16 %v507
    %v544 = vunpack.c.l.b16 %v508
    %v545 = vunpack.c.l.b16 %v509
    %v546 = vpack.c.b16 %v531, %v530
    %v547 = vpack.c.b16 %v533, %v532
    %v548 = vpack.c.b16 %v535, %v534
    %v549 = vpack.c.b16 %v537, %v536
    %v550 = vpack.c.b16 %v539, %v538
    %v551 = vpack.c.b16 %v541, %v540
    %v552 = vpack.c.b16 %v543, %v542
    %v553 = vpack.c.b16 %v545, %v544
    %562 = vmatpush.bf16.msra.mxu0 %v553
    %563 = vmatpush.bf16.msra.mxu0 %v552
    %564 = vmatpush.bf16.msra.mxu0 %v551
    %565 = vmatpush.bf16.msra.mxu0 %v550
    %566 = vmatpush.bf16.msra.mxu0 %v549
    %567 = vmatpush.bf16.msra.mxu0 %v548
    %568 = vmatpush.bf16.msra.mxu0 %v547
    %569 = vmatpush.bf16.msra.mxu0 %v546
    %570 = vmatmul.bf16.gmra.mxu0 %v493
    %v571 = vpop.f32.mrf.mxu0
    %v572 = vadd.f32 %v512, %v571
    %v573 = vpop.f32.mrf.mxu0
    %574 = vdwg.mxu0
    %vm575 = vcmp.ge.s32.totalorder %v119, 2
    %v576 = vmax.f32 %v572, 0.0
    %v577 = vsel %vm575, %v576, %v572
    %578 = vst [vmem:[%s11] sm:$0xff] %v577
    // Predicated region
    $region66: #{fixed_bssid_mlp.1} parent=1 // pred_check
      _
    $region67: #{fixed_bssid_mlp.1} parent=1 // pred_check_branch
      %580 = sbr.rel (0) target = $region69
    $region68: #{fixed_bssid_mlp.1} parent=1 // pred_region
      _
    $region69: #{fixed_bssid_mlp.1} parent=1 // pred_fallthru
      _
    // Predicated region
    $region70: #{fixed_bssid_mlp.1} parent=1 // pred_check
      _
    $region71: #{fixed_bssid_mlp.1} parent=1 // pred_check_branch
      %582 = sbr.rel (0) target = $region73
    $region72: #{fixed_bssid_mlp.1} parent=1 // pred_region
      _
    $region73: #{fixed_bssid_mlp.1} parent=1 // pred_fallthru
      _
    %583 = vsyncpa [#allocation3], 1
    %584 = vsyncpa [#allocation5], 1
    %585 = vsyncpa [#allocation8], 1

</llo_original>
